<compile_context>
chip_gen: v7x
topology: tpu7x:2x2x1
jax: 0.10.0
libtpu: 0.0.40
codegen_flags: <defaults>
</compile_context>

<pallas_src>
import math
import jax
import jax.numpy as jnp
from jax import lax
from jax.experimental import pallas as pl
from jax.experimental.pallas import tpu as pltpu

_EPS = 1e-12  # matches torch.nn.functional.normalize default eps


def _round_up(x, m):
    return ((x + m - 1) // m) * m


def _pick_tile(dim, candidates, waste=1.1):
    """Largest tile (candidates descending) whose padded extent is within
    `waste` of the best achievable padded extent (bounds padding waste)."""
    padded = [_round_up(dim, t) for t in candidates]
    best = min(padded)
    for t, p in zip(candidates, padded):
        if p <= best * waste:
            return t
    return candidates[-1]


def _kernel_f32(x_ref, w_ref, winv_ref, invx_ref, o_ref):
    """f32 output path: o_ref doubles as the accumulator (resident across K).

    Grid = (B tiles, OUT tiles, IN tiles); IN (K) is the reduction axis.
      x_ref:    (tm, tk)  raw input tile
      w_ref:    (tn, tk)  raw weight tile (natural (OUT, IN) layout)
      winv_ref: (1,  tn)  sigma * 1/max(||w_row||, eps)   (precomputed, f32)
      invx_ref: (tm, 1)   1/max(||x_row||, eps)           (precomputed, f32)
      o_ref:    (tm, tn)  f32 output tile == accumulator
    """
    k = pl.program_id(2)

    @pl.when(k == 0)
    def _init():
        o_ref[...] = jnp.zeros_like(o_ref)

    # Raw dot product, contracting the feature (last) dims of both operands
    # directly on the MXU — no transpose of the weight tile.
    o_ref[...] += lax.dot_general(
        x_ref[...], w_ref[...],
        dimension_numbers=(((1,), (1,)), ((), ())),
        preferred_element_type=jnp.float32,
    )

    @pl.when(k == pl.num_programs(2) - 1)
    def _finalize():
        o_ref[...] = o_ref[...] * winv_ref[...] * invx_ref[...]


def _kernel_acc(x_ref, w_ref, winv_ref, invx_ref, o_ref, acc_ref):
    """Generic path (non-f32 output): f32 VMEM scratch accumulator."""
    k = pl.program_id(2)

    @pl.when(k == 0)
    def _init():
        acc_ref[...] = jnp.zeros_like(acc_ref)

    acc_ref[...] += lax.dot_general(
        x_ref[...], w_ref[...],
        dimension_numbers=(((1,), (1,)), ((), ())),
        preferred_element_type=jnp.float32,
    )

    @pl.when(k == pl.num_programs(2) - 1)
    def _finalize():
        o_ref[...] = (acc_ref[...] * winv_ref[...] * invx_ref[...]).astype(o_ref.dtype)


def cosine_normalization_layer(x, weight, sigma, *, tm=None, tn=None, tk=None):
    """x: (B, in_features), weight: (out_features, in_features),
    sigma: scalar (or None). Returns (B, out_features) with x.dtype."""
    B, in_features = x.shape
    out_features, in_features_w = weight.shape
    assert in_features == in_features_w

    # Pin the compute dtype (avoid silent promotion in the MXU contraction).
    if weight.dtype != x.dtype:
        weight = weight.astype(x.dtype)

    # --- Tiny per-row inverse-norm vectors, precomputed once in f32. ---------
    w32 = weight.astype(jnp.float32)
    inv_w = lax.rsqrt(jnp.maximum(jnp.sum(w32 * w32, axis=1), _EPS * _EPS))
    if sigma is None:
        sigma_val = jnp.float32(1.0)
    else:
        sigma_val = jnp.asarray(sigma, dtype=jnp.float32).reshape(())
    winv = (sigma_val * inv_w).reshape(1, out_features)          # (1, OUT) f32

    x32 = x.astype(jnp.float32)
    inv_x = lax.rsqrt(jnp.maximum(jnp.sum(x32 * x32, axis=1), _EPS * _EPS))
    inv_x = inv_x.reshape(B, 1)                                  # (B, 1) f32

    # --- Adaptive tile selection (bounded padding waste, dtype-aware). -------
    itemsize = jnp.dtype(x.dtype).itemsize
    sub = {4: 8, 2: 16, 1: 32}.get(itemsize, 8)     # sublane granularity
    if tm is None:
        tm = _pick_tile(B, tuple(t for t in (512, 256, 128, 64, 32, 16, 8)
                                 if t % sub == 0))
    if tn is None:
        tn = _pick_tile(out_features, (512, 256, 128))
    if tk is None:
        tk = _pick_tile(in_features, (1024, 512, 256, 128))

    # v7x megacore: if both parallel axes collapse to one block on a problem
    # that is large enough to split, halve a tile so both TensorCores get work.
    if _round_up(B, tm) // tm == 1 and _round_up(out_features, tn) // tn == 1:
        if _round_up(out_features, 128) >= 256 and tn >= 256:
            tn //= 2
        elif _round_up(B, sub) >= 2 * sub and tm >= 2 * sub:
            tm //= 2

    Bp = _round_up(B, tm)
    OUTp = _round_up(out_features, tn)
    INp = _round_up(in_features, tk)

    # --- Pad to whole tiles (padded rows/cols produce zeros, sliced off). ----
    x_p = x
    if Bp != B or INp != in_features:
        x_p = jnp.pad(x, ((0, Bp - B), (0, INp - in_features)))
    w_p = weight
    if OUTp != out_features or INp != in_features:
        w_p = jnp.pad(weight, ((0, OUTp - out_features), (0, INp - in_features)))
    winv_p = winv if OUTp == out_features else jnp.pad(
        winv, ((0, 0), (0, OUTp - out_features)))
    invx_p = inv_x if Bp == B else jnp.pad(inv_x, ((0, Bp - B), (0, 0)))

    grid = (Bp // tm, OUTp // tn, INp // tk)

    # f32 outputs accumulate in place; others use a f32 VMEM scratch.
    direct_acc = x.dtype == jnp.float32
    kernel = _kernel_f32 if direct_acc else _kernel_acc
    scratch = [] if direct_acc else [pltpu.VMEM((tm, tn), jnp.float32)]

    # Explicit VMEM budget: double-buffered x/W/out blocks (+ acc scratch).
    vmem_need = (2 * (tm * tk + tn * tk) * itemsize
                 + 2 * tm * tn * itemsize
                 + (0 if direct_acc else tm * tn * 4)
                 + 4 * (tm + tn) * 4)
    vmem_limit = int(min(max(2 * vmem_need, 32 * 1024 * 1024), 48 * 1024 * 1024))

    out_p = pl.pallas_call(
        kernel,
        out_shape=jax.ShapeDtypeStruct((Bp, OUTp), x.dtype),
        grid_spec=pltpu.PrefetchScalarGridSpec(
            num_scalar_prefetch=0,
            grid=grid,
            in_specs=[
                pl.BlockSpec((tm, tk), lambda i, j, k: (i, k)),   # x
                pl.BlockSpec((tn, tk), lambda i, j, k: (j, k)),   # W (OUT, IN)
                pl.BlockSpec((1, tn), lambda i, j, k: (0, j)),    # sigma/||w||
                pl.BlockSpec((tm, 1), lambda i, j, k: (i, 0)),    # 1/||x||
            ],
            out_specs=pl.BlockSpec((tm, tn), lambda i, j, k: (i, j)),
            scratch_shapes=scratch,
        ),
        compiler_params=pltpu.CompilerParams(
            dimension_semantics=("parallel", "parallel", "arbitrary"),
            vmem_limit_bytes=vmem_limit),
    )(x_p, w_p, winv_p, invx_p)

    return out_p[:B, :out_features]


def _reference(x, weight, sigma):
    xn = x / jnp.maximum(jnp.linalg.norm(x, axis=1, keepdims=True), _EPS)
    wn = weight / jnp.maximum(jnp.linalg.norm(weight, axis=1, keepdims=True), _EPS)
    out = xn @ wn.T
    s = 1.0 if sigma is None else sigma
    return s * out


if __name__ == "__main__":
    batch = 8
    in_features = 32
    out_features = 16

    key = jax.random.PRNGKey(0)
    k_x, k_w = jax.random.split(key)

    # Deterministic parameter init mirroring reset_parameters():
    #   weight ~ U(-stdv, stdv), stdv = 1/sqrt(in_features); sigma = 1.0
    stdv = 1.0 / math.sqrt(in_features)
    weight = jax.random.uniform(
        k_w, (out_features, in_features), minval=-stdv, maxval=stdv,
        dtype=jnp.float32)
    sigma = jnp.float32(1.0)

    x = jax.random.normal(k_x, (batch, in_features), dtype=jnp.float32)

    out = cosine_normalization_layer(x, weight, sigma)
    out = jax.block_until_ready(out)

    ref = _reference(x, weight, sigma)
    assert out.shape == (batch, out_features)
    assert jnp.allclose(out, ref, atol=1e-5, rtol=1e-5), "mismatch vs reference"

    print("KERNEL_OK")
</pallas_src>

<mosaic_0001>
module attributes {stable_mosaic.version = 11 : i64} {
  func.func @_kernel_f32(%arg0: i32, %arg1: i32, %arg2: i32, %arg3: memref<8x128xf32, #tpu.memory_space<vmem>>, %arg4: memref<128x128xf32, #tpu.memory_space<vmem>>, %arg5: memref<1x128xf32, #tpu.memory_space<vmem>>, %arg6: memref<8x1xf32, #tpu.memory_space<vmem>>, %arg7: memref<8x128xf32, #tpu.memory_space<vmem>>) attributes {dimension_semantics = [#tpu.dimension_semantics<parallel>, #tpu.dimension_semantics<parallel>, #tpu.dimension_semantics<arbitrary>], iteration_bounds = array<i64: 1, 1, 1>, scalar_prefetch = 0 : i64, scratch_operands = 0 : i64, tpu.core_type = #tpu.core_type<tc>, window_params = [{transform_indices = @transform_0, window_bounds = array<i64: 8, 128>}, {transform_indices = @transform_1, window_bounds = array<i64: 128, 128>}, {transform_indices = @transform_2, window_bounds = array<i64: 1, 128>}, {transform_indices = @transform_3, window_bounds = array<i64: 8, 1>}, {transform_indices = @transform_4, window_bounds = array<i64: 8, 128>}]} {
    %c0_i32 = arith.constant 0 : i32
    %0 = arith.cmpi eq, %arg2, %c0_i32 : i32
    %1 = arith.extui %0 : i1 to i32
    %c0_i32_0 = arith.constant 0 : i32
    %2 = arith.cmpi ne, %1, %c0_i32_0 : i32
    scf.if %2 {
      %cst_10 = arith.constant 0.000000e+00 : f32
      %12 = vector.broadcast %cst_10 : f32 to vector<8x128xf32>
      %c0_11 = arith.constant 0 : index
      %c0_12 = arith.constant 0 : index
      %13 = vector.load %arg7[%c0_11, %c0_12] : memref<8x128xf32, #tpu.memory_space<vmem>>, vector<8x128xf32>
      tpu.vector_store %arg7[%c0_11, %c0_12], %12 {strides = array<i32>} : memref<8x128xf32, #tpu.memory_space<vmem>>, vector<8x128xf32>,
    } else {
    }
    %c0 = arith.constant 0 : index
    %c0_1 = arith.constant 0 : index
    %3 = vector.load %arg7[%c0, %c0_1] : memref<8x128xf32, #tpu.memory_space<vmem>>, vector<8x128xf32>
    %c0_2 = arith.constant 0 : index
    %c0_3 = arith.constant 0 : index
    %4 = vector.load %arg3[%c0_2, %c0_3] : memref<8x128xf32, #tpu.memory_space<vmem>>, vector<8x128xf32>
    %c0_4 = arith.constant 0 : index
    %c0_5 = arith.constant 0 : index
    %5 = vector.load %arg4[%c0_4, %c0_5] : memref<128x128xf32, #tpu.memory_space<vmem>>, vector<128x128xf32>
    %cst = arith.constant dense<0.000000e+00> : vector<8x128xf32>
    %6 = tpu.matmul %4, %5, %cst {dimension_numbers = #tpu.dot_dimension_numbers<[1], [1], [0], [0], [0, 0, 1, 0], [], []>} : vector<8x128xf32>, vector<128x128xf32>, vector<8x128xf32> -> vector<8x128xf32>
    %7 = arith.addf %3, %6 : vector<8x128xf32>
    %c0_6 = arith.constant 0 : index
    %c0_7 = arith.constant 0 : index
    %8 = vector.load %arg7[%c0_6, %c0_7] : memref<8x128xf32, #tpu.memory_space<vmem>>, vector<8x128xf32>
    tpu.vector_store %arg7[%c0_6, %c0_7], %7 {strides = array<i32>} : memref<8x128xf32, #tpu.memory_space<vmem>>, vector<8x128xf32>,
    %c0_i32_8 = arith.constant 0 : i32
    %9 = arith.cmpi eq, %arg2, %c0_i32_8 : i32
    %10 = arith.extui %9 : i1 to i32
    %c0_i32_9 = arith.constant 0 : i32
    %11 = arith.cmpi ne, %10, %c0_i32_9 : i32
    scf.if %11 {
      %c0_10 = arith.constant 0 : index
      %c0_11 = arith.constant 0 : index
      %12 = vector.load %arg7[%c0_10, %c0_11] : memref<8x128xf32, #tpu.memory_space<vmem>>, vector<8x128xf32>
      %c0_12 = arith.constant 0 : index
      %c0_13 = arith.constant 0 : index
      %13 = vector.load %arg5[%c0_12, %c0_13] : memref<1x128xf32, #tpu.memory_space<vmem>>, vector<1x128xf32>
      %14 = vector.broadcast %13 : vector<1x128xf32> to vector<8x128xf32>
      %15 = arith.mulf %12, %14 : vector<8x128xf32>
      %c0_14 = arith.constant 0 : index
      %c0_15 = arith.constant 0 : index
      %16 = vector.load %arg6[%c0_14, %c0_15] : memref<8x1xf32, #tpu.memory_space<vmem>>, vector<8x1xf32>
      %17 = vector.broadcast %16 : vector<8x1xf32> to vector<8x128xf32>
      %18 = arith.mulf %15, %17 : vector<8x128xf32>
      %c0_16 = arith.constant 0 : index
      %c0_17 = arith.constant 0 : index
      %19 = vector.load %arg7[%c0_16, %c0_17] : memref<8x128xf32, #tpu.memory_space<vmem>>, vector<8x128xf32>
      tpu.vector_store %arg7[%c0_16, %c0_17], %18 {strides = array<i32>} : memref<8x128xf32, #tpu.memory_space<vmem>>, vector<8x128xf32>,
    } else {
    }
    return
  }
  func.func @transform_0(%arg0: i32, %arg1: i32, %arg2: i32) -> (i32, i32) {
    %c0_i32 = arith.constant 0 : i32
    return %arg0, %arg2 : i32, i32
  }
  func.func @transform_1(%arg0: i32, %arg1: i32, %arg2: i32) -> (i32, i32) {
    %c0_i32 = arith.constant 0 : i32
    return %arg1, %arg2 : i32, i32
  }
  func.func @transform_2(%arg0: i32, %arg1: i32, %arg2: i32) -> (i32, i32) {
    %c0_i32 = arith.constant 0 : i32
    %c0_i32_0 = arith.constant 0 : i32
    return %c0_i32, %arg1 : i32, i32
  }
  func.func @transform_3(%arg0: i32, %arg1: i32, %arg2: i32) -> (i32, i32) {
    %c0_i32 = arith.constant 0 : i32
    %c0_i32_0 = arith.constant 0 : i32
    return %arg0, %c0_i32 : i32, i32
  }
  func.func @transform_4(%arg0: i32, %arg1: i32, %arg2: i32) -> (i32, i32) {
    %c0_i32 = arith.constant 0 : i32
    return %arg0, %arg1 : i32, i32
  }
}

</mosaic_0001>

<llo_original>
// kernel: tpu_custom_call.1
$region0: #{tpu_custom_call.1}
  #allocation0 [shape = 'u32[]', space=smem, size = 0x4, offset = 0x4, fixed_abs, tag = 'smem constant byte address 0x4 - core index']
  #allocation1 [shape = 'u32[144,128]{1,0:T(1,128)}', space=vmem, size = 0x12000, scoped, tag = 'internal scratch']
  %s0 = inlined_call_operand.vmem [shape: f32[8,128], index: 0, kind: input, shape index: {}]
  %s1 = inlined_call_operand.hbm [shape: f32[128,128], index: 1, kind: input, shape index: {}]
  %s2 = inlined_call_operand.vmem [shape: f32[1,128], index: 2, kind: input, shape index: {}]
  %s3 = inlined_call_operand.vmem [shape: f32[8,1], index: 3, kind: input, shape index: {}]
  %s4 = inlined_call_operand.hbm [shape: f32[8,128], index: 4, kind: output, shape index: {}]
  %s5 = sld [smem:[#allocation0]]
  $region38: #{tpu_custom_call.1} parent=0
    _
  %s7 = ssub.s32 1, %s5
  %s8 = scalar_select 0, %s7, %s5
  $region1: #{tpu_custom_call.1} parent=0
    #allocation2 [shape = 'u8[65536]{0}', space=vmem, size = 0x10000, scoped, tag = 'input window, operand 1, single buffered']
    #allocation3 [shape = 's32[1]{0}', space=sflag, size = 0x4, scoped, tag = 'scoped memory for tpu_custom_call.1']
    #allocation4 [shape = 's32[1]{0}', space=sflag, size = 0x4, scoped, tag = 'scoped memory for tpu_custom_call.1']
    #allocation5 [shape = 'u8[4096]{0}', space=vmem, size = 0x1000, scoped, tag = 'output window, operand 0, single buffered']
    %9 = vsyncpa [#allocation3], 0
    %10 = vsyncpa [#allocation4], 0
    // Predicated region
    $region2: #{tpu_custom_call.1} parent=1 // pred_check
      _
    $region3: #{tpu_custom_call.1} parent=1 // pred_check_branch
      %12 = sbr.rel (0) target = $region5
    $region4: #{tpu_custom_call.1} parent=1 // pred_region
      _
    $region5: #{tpu_custom_call.1} parent=1 // pred_fallthru
      _
    // Predicated region
    $region6: #{tpu_custom_call.1} parent=1 // pred_check
      _
    $region7: #{tpu_custom_call.1} parent=1 // pred_check_branch
      %14 = sbr.rel (0) target = $region9
    $region8: #{tpu_custom_call.1} parent=1 // pred_region
      %s16 = ssub.s32 2048, 2048
      %17 = vsyncadd [#allocation3], %s16
      %s18 = sshll.u32 [#allocation2], 4
      %s19 = int_to_ptr.vmem [resolvable:$true] %s18
      %24 = dma.hbm_to_vmem [thread:$0]  %s1, 2048, %s19, [#allocation3], 128, 128, 8
    $region9: #{tpu_custom_call.1} parent=1 // pred_fallthru
      _
    // Predicated region
    $region10: #{tpu_custom_call.1} parent=1 // pred_check
      _
    $region11: #{tpu_custom_call.1} parent=1 // pred_check_branch
      %26 = sbr.rel (0) target = $region13
    $region12: #{tpu_custom_call.1} parent=1 // pred_region
      _
    $region13: #{tpu_custom_call.1} parent=1 // pred_fallthru
      _
    // Predicated region
    $region14: #{tpu_custom_call.1} parent=1 // pred_check
      _
    $region15: #{tpu_custom_call.1} parent=1 // pred_check_branch
      %28 = sbr.rel (0) target = $region17
    $region16: #{tpu_custom_call.1} parent=1 // pred_region
      _
    $region17: #{tpu_custom_call.1} parent=1 // pred_fallthru
      _
    // Predicated region
    $region18: #{tpu_custom_call.1} parent=1 // pred_check
      _
    $region19: #{tpu_custom_call.1} parent=1 // pred_check_branch
      %30 = sbr.rel (0) target = $region21
    $region20: #{tpu_custom_call.1} parent=1 // pred_region
      %31 = dma.done [#allocation3], 2048
    $region21: #{tpu_custom_call.1} parent=1 // pred_fallthru
      _
    %p32 = scmp.eq.s32.totalorder 0, 0
    // Predicated region
    $region22: #{tpu_custom_call.1} parent=1 // pred_check
      %p33 = pneg %p32
    $region23: #{tpu_custom_call.1} parent=1 // pred_check_branch
      %35 = sbr.rel (%p33) target = $region25
    $region24: #{tpu_custom_call.1} parent=1 // pred_region
      %36 = vst [vmem:[#allocation5] sm:$0xff] 0.0
    $region25: #{tpu_custom_call.1} parent=1 // pred_fallthru
      _
    %v37 = vld [vmem:[#allocation5] sm:$0xff]
    %v38 = vld [vmem:[%s0] sm:$0xff]
    %v39 = vld [vmem:[#allocation2] sm:$0xff]
    %v40 = vld [vmem:[#allocation2 + $0x8] sm:$0xff]
    %v41 = vld [vmem:[#allocation2 + $0x10] sm:$0xff]
    %v42 = vld [vmem:[#allocation2 + $0x18] sm:$0xff]
    %v43 = vld [vmem:[#allocation2 + $0x20] sm:$0xff]
    %v44 = vld [vmem:[#allocation2 + $0x28] sm:$0xff]
    %v45 = vld [vmem:[#allocation2 + $0x30] sm:$0xff]
    %v46 = vld [vmem:[#allocation2 + $0x38] sm:$0xff]
    %v47 = vld [vmem:[#allocation2 + $0x40] sm:$0xff]
    %v48 = vld [vmem:[#allocation2 + $0x48] sm:$0xff]
    %v49 = vld [vmem:[#allocation2 + $0x50] sm:$0xff]
    %v50 = vld [vmem:[#allocation2 + $0x58] sm:$0xff]
    %v51 = vld [vmem:[#allocation2 + $0x60] sm:$0xff]
    %v52 = vld [vmem:[#allocation2 + $0x68] sm:$0xff]
    %v53 = vld [vmem:[#allocation2 + $0x70] sm:$0xff]
    %v54 = vld [vmem:[#allocation2 + $0x78] sm:$0xff]
    %55 = vmatprep.subr.mxu0 0.0
    %56 = vmatpush1.xpose.msra.mxu0 %v39
    %57 = vmatprep.subr.mxu0 0.0
    %58 = vmatpush1.xpose.msra.mxu0 %v40
    %59 = vmatprep.subr.mxu0 0.0
    %60 = vmatpush1.xpose.msra.mxu0 %v41
    %61 = vmatprep.subr.mxu0 0.0
    %62 = vmatpush1.xpose.msra.mxu0 %v42
    %63 = vmatprep.subr.mxu0 0.0
    %64 = vmatpush1.xpose.msra.mxu0 %v43
    %65 = vmatprep.subr.mxu0 0.0
    %66 = vmatpush1.xpose.msra.mxu0 %v44
    %67 = vmatprep.subr.mxu0 0.0
    %68 = vmatpush1.xpose.msra.mxu0 %v45
    %69 = vmatprep.subr.mxu0 0.0
    %70 = vmatpush1.xpose.msra.mxu0 %v46
    %71 = vmatprep.subr.mxu0 0.0
    %72 = vmatpush1.xpose.msra.mxu0 %v47
    %73 = vmatprep.subr.mxu0 0.0
    %74 = vmatpush1.xpose.msra.mxu0 %v48
    %75 = vmatprep.subr.mxu0 0.0
    %76 = vmatpush1.xpose.msra.mxu0 %v49
    %77 = vmatprep.subr.mxu0 0.0
    %78 = vmatpush1.xpose.msra.mxu0 %v50
    %79 = vmatprep.subr.mxu0 0.0
    %80 = vmatpush1.xpose.msra.mxu0 %v51
    %81 = vmatprep.subr.mxu0 0.0
    %82 = vmatpush1.xpose.msra.mxu0 %v52
    %83 = vmatprep.subr.mxu0 0.0
    %84 = vmatpush1.xpose.msra.mxu0 %v53
    %85 = vmatprep.subr.mxu0 0.0
    %86 = vmatpush1.xpose.msra.mxu0 %v54
    %87 = vmatprep.subr.mxu0 0.0
    %88 = vmatpush1.xpose.msra.mxu0 0.0
    %89 = vmatprep.subr.mxu0 0.0
    %90 = vmatpush1.xpose.msra.mxu0 0.0
    %91 = vmatprep.subr.mxu0 0.0
    %92 = vmatpush1.xpose.msra.mxu0 0.0
    %93 = vmatprep.subr.mxu0 0.0
    %94 = vmatpush1.xpose.msra.mxu0 0.0
    %95 = vmatprep.subr.mxu0 0.0
    %96 = vmatpush1.xpose.msra.mxu0 0.0
    %97 = vmatprep.subr.mxu0 0.0
    %98 = vmatpush1.xpose.msra.mxu0 0.0
    %99 = vmatprep.subr.mxu0 0.0
    %100 = vmatpush1.xpose.msra.mxu0 0.0
    %101 = vmatprep.subr.mxu0 0.0
    %102 = vmatpush1.xpose.msra.mxu0 0.0
    %103 = vmatprep.subr.mxu0 0.0
    %104 = vmatpush1.xpose.msra.mxu0 0.0
    %105 = vmatprep.subr.mxu0 0.0
    %106 = vmatpush1.xpose.msra.mxu0 0.0
    %107 = vmatprep.subr.mxu0 0.0
    %108 = vmatpush1.xpose.msra.mxu0 0.0
    %109 = vmatprep.subr.mxu0 0.0
    %110 = vmatpush1.xpose.msra.mxu0 0.0
    %111 = vmatprep.subr.mxu0 0.0
    %112 = vmatpush1.xpose.msra.mxu0 0.0
    %113 = vmatprep.subr.mxu0 0.0
    %114 = vmatpush1.xpose.msra.mxu0 0.0
    %115 = vmatprep.subr.mxu0 0.0
    %116 = vmatpush1.xpose.msra.mxu0 0.0
    %117 = vmatprep.subr.mxu0 0.0
    %118 = vmatpush1.xpose.msra.mxu0 0.0
    %119 = vmatprep.mubr.f32.mxu0 0.0
    %120 = vmatmul.mubr.f32.gmra.mrb[0].mxu0 %v38
    %v121 = vpop.f32.mrb[0].mxu0
    %v122 = vadd.f32 0.0, %v121
    %v123 = vpop.f32.mrb[0].mxu0
    %124 = vdwg.mxu0
    %v125 = vadd.f32 %v37, %v122
    %126 = vst [vmem:[#allocation5] sm:$0xff] %v125
    // Predicated region
    $region26: #{tpu_custom_call.1} parent=1 // pred_check
      %p127 = pneg %p32
    $region27: #{tpu_custom_call.1} parent=1 // pred_check_branch
      %129 = sbr.rel (%p127) target = $region29
    $region28: #{tpu_custom_call.1} parent=1 // pred_region
      %v130 = vld [vmem:[#allocation5] sm:$0xff]
      %v131 = vld [vmem:[%s2] sm:$0x1]
      %v133 = vlaneseq
      %v134 = vshrl.u32 %v133, 7
      %v135 = vsub.s32 0, %v134
      %v136 = vrot.slane %v131, %v135
      %v138 = vmul.f32 %v130, %v136
      %v139 = vld [vmem:[%s3] sm:$0xff]
      %141 = vset.pattern.permute.xlu0 0
      %142 = vperm.xlu0 %141, %v139
      %v143 = vpop.permute.xlu0 %142
      %v145 = vmul.f32 %v138, %v143
      %146 = vst [vmem:[#allocation5] sm:$0xff] %v145
    $region29: #{tpu_custom_call.1} parent=1 // pred_fallthru
      _
    // Predicated region
    $region30: #{tpu_custom_call.1} parent=1 // pred_check
      _
    $region31: #{tpu_custom_call.1} parent=1 // pred_check_branch
      %148 = sbr.rel (0) target = $region33
    $region32: #{tpu_custom_call.1} parent=1 // pred_region
      %s150 = ssub.s32 128, 128
      %151 = vsyncadd [#allocation4], %s150
      %s153 = sshll.u32 [#allocation5], 4
      %s154 = int_to_ptr.vmem [resolvable:$true] %s153
      %156 = dma.vmem_to_hbm [thread:$0]  %s154, 128, %s4, [#allocation4]
    $region33: #{tpu_custom_call.1} parent=1 // pred_fallthru
      _
    // Predicated region
    $region34: #{tpu_custom_call.1} parent=1 // pred_check
      _
    $region35: #{tpu_custom_call.1} parent=1 // pred_check_branch
      %158 = sbr.rel (0) target = $region37
    $region36: #{tpu_custom_call.1} parent=1 // pred_region
      %159 = dma.done [#allocation4], 128
    $region37: #{tpu_custom_call.1} parent=1 // pred_fallthru
      _
    %160 = vsyncpa [#allocation3], 1
    %161 = vsyncpa [#allocation4], 1

</llo_original>
